<compile_context>
chip_gen: v7x
topology: tpu7x:2x2x1
jax: 0.10.0
libtpu: 0.0.40
codegen_flags: <defaults>
</compile_context>

<pallas_src>
import functools
import math

import jax
import jax.numpy as jnp
from jax import lax
from jax.experimental import pallas as pl
from jax.experimental.pallas import tpu as pltpu

_HIGH = jax.lax.Precision.HIGHEST
_INV_SQRT2 = 1.0 / math.sqrt(2.0)


# ----------------------------- helpers --------------------------------------

def _round_up(x, m):
    return ((x + m - 1) // m) * m


def _pick_tile(hw_pad, n_rows, budget_bytes=4 << 20, max_lanes=2048):
    """Largest multiple of 128 that divides hw_pad, is <= max_lanes, and keeps
    an (n_rows, tile) f32 working set under ~budget_bytes."""
    t = min(hw_pad, max_lanes)
    t = max(128, (t // 128) * 128)
    while t > 128 and (hw_pad % t != 0 or n_rows * t * 4 > budget_bytes):
        t -= 128
    return t


def _pad_lanes(x, hw_pad):
    hw = x.shape[-1]
    if hw == hw_pad:
        return x
    return jnp.pad(x, ((0, 0), (0, 0), (0, hw_pad - hw)))


def _im2col_3x3(x):
    """x: (N, C, H, W) -> (N, C*9, H*W); matches conv3x3, stride 1, pad 1."""
    N, C, H, W = x.shape
    xp = jnp.pad(x, ((0, 0), (0, 0), (1, 1), (1, 1)))
    cols = [xp[:, :, kh:kh + H, kw:kw + W] for kh in range(3) for kw in range(3)]
    p = jnp.stack(cols, axis=2)            # (N, C, 9, H, W)
    return p.reshape(N, C * 9, H * W)


# ----------------------------- kernels ---------------------------------------

def _swish(x):
    return x * (1.0 / (1.0 + jnp.exp(-x)))


def _ln_normalize(x, eps):
    # x: (C, T); LayerNorm2d stats over channels (sublane reduction).
    u = jnp.mean(x, axis=0, keepdims=True)
    d = x - u
    v = jnp.mean(d * d, axis=0, keepdims=True)
    return d * jax.lax.rsqrt(v + eps)


def _linear_kernel(t_ref, w_ref, b_ref, o_ref):
    # diffusion_proj: (N, T) @ (T, C) + (1, C)
    acc = jnp.dot(t_ref[...].astype(jnp.float32), w_ref[...].astype(jnp.float32),
                  preferred_element_type=jnp.float32, precision=_HIGH)
    o_ref[...] = (acc + b_ref[...].astype(jnp.float32)).astype(o_ref.dtype)


def _ln1_add_kernel(x_ref, g_ref, b_ref, t_ref, xn_ref, y0_ref, *, eps):
    # x_ref: (1, C, T); g/b: (C, 1); t_ref: (1, C, 1)
    x = x_ref[0].astype(jnp.float32)
    xn = _ln_normalize(x, eps)
    xn = g_ref[...].astype(jnp.float32) * xn + b_ref[...].astype(jnp.float32)
    xn_ref[0] = xn.astype(xn_ref.dtype)
    y0_ref[0] = (xn + t_ref[0].astype(jnp.float32)).astype(y0_ref.dtype)


def _conv_swish_ln_kernel(w_ref, bc_ref, p_ref, g_ref, b_ref, o_ref, *, eps):
    # conv1 (as matmul over patches) + bias + swish + LayerNorm2d(norm2)
    p = p_ref[0].astype(jnp.float32)                              # (Cin*9, T)
    h = jnp.dot(w_ref[...].astype(jnp.float32), p,
                preferred_element_type=jnp.float32, precision=_HIGH)
    h = _swish(h + bc_ref[...].astype(jnp.float32))
    hn = _ln_normalize(h, eps)
    o_ref[0] = (g_ref[...].astype(jnp.float32) * hn
                + b_ref[...].astype(jnp.float32)).astype(o_ref.dtype)


def _conv_swish_skip_kernel(w_ref, bc_ref, p_ref, ws_ref, bs_ref, xn_ref, o_ref):
    # conv2 + bias + swish + 1x1 skip(conv_scale) + (.)/sqrt(2)
    p = p_ref[0].astype(jnp.float32)                              # (Cout*9, T)
    h = jnp.dot(w_ref[...].astype(jnp.float32), p,
                preferred_element_type=jnp.float32, precision=_HIGH)
    h = _swish(h + bc_ref[...].astype(jnp.float32))
    skip = jnp.dot(ws_ref[...].astype(jnp.float32), xn_ref[0].astype(jnp.float32),
                   preferred_element_type=jnp.float32, precision=_HIGH)
    skip = skip + bs_ref[...].astype(jnp.float32)
    o_ref[0] = ((h + skip) * _INV_SQRT2).astype(o_ref.dtype)


# ----------------------------- wrappers ---------------------------------------

def _diffusion_proj(t, wp, bp):
    N, T = t.shape
    C = wp.shape[0]
    return pl.pallas_call(
        _linear_kernel,
        out_shape=jax.ShapeDtypeStruct((N, C), t.dtype),
        grid_spec=pltpu.PrefetchScalarGridSpec(
            num_scalar_prefetch=0,
            grid=(1,),
            in_specs=[
                pl.BlockSpec((N, T), lambda i: (0, 0)),
                pl.BlockSpec((T, C), lambda i: (0, 0)),
                pl.BlockSpec((1, C), lambda i: (0, 0)),
            ],
            out_specs=pl.BlockSpec((N, C), lambda i: (0, 0)),
        ),
    )(t, wp.T, bp.reshape(1, C))


def residual_block_2d(x, t, params, eps=1e-5):
    """x: (N, C_in, H, W); t: (N, temb). Returns (N, C_out, H, W)."""
    N, C_in, H, W = x.shape
    C_out = params["conv1_w"].shape[0]
    HW = H * W
    hw_pad = _round_up(HW, 128)
    cparams = pltpu.CompilerParams(dimension_semantics=("parallel", "parallel"))

    g1 = params["g1"].reshape(C_in, 1)
    b1 = params["b1"].reshape(C_in, 1)
    g2 = params["g2"].reshape(C_out, 1)
    b2 = params["b2"].reshape(C_out, 1)
    bc1 = params["conv1_b"].reshape(C_out, 1)
    bc2 = params["conv2_b"].reshape(C_out, 1)
    w1f = params["conv1_w"].reshape(C_out, C_in * 9)
    w2f = params["conv2_w"].reshape(C_out, C_out * 9)
    if C_in != C_out:
        ws = params["scale_w"]
        bs = params["scale_b"].reshape(C_out, 1)
    else:
        ws = jnp.eye(C_out, dtype=x.dtype)        # conv_scale is Identity
        bs = jnp.zeros((C_out, 1), dtype=x.dtype)

    # --- 0) diffusion_proj(t) -> (N, C_in) -----------------------------------
    tproj = _diffusion_proj(t, params["proj_w"], params["proj_b"])
    tproj3 = tproj.reshape(N, C_in, 1)

    # --- 1) LayerNorm2d(norm1) + temb broadcast add (fused) ------------------
    t1 = _pick_tile(hw_pad, 3 * C_in)
    x2 = _pad_lanes(x.reshape(N, C_in, HW), hw_pad)
    xn2, y02 = pl.pallas_call(
        functools.partial(_ln1_add_kernel, eps=eps),
        out_shape=(jax.ShapeDtypeStruct((N, C_in, hw_pad), x.dtype),
                   jax.ShapeDtypeStruct((N, C_in, hw_pad), x.dtype)),
        grid_spec=pltpu.PrefetchScalarGridSpec(
            num_scalar_prefetch=0,
            grid=(N, hw_pad // t1),
            in_specs=[
                pl.BlockSpec((1, C_in, t1), lambda i, j: (i, 0, j)),
                pl.BlockSpec((C_in, 1), lambda i, j: (0, 0)),
                pl.BlockSpec((C_in, 1), lambda i, j: (0, 0)),
                pl.BlockSpec((1, C_in, 1), lambda i, j: (i, 0, 0)),
            ],
            out_specs=[
                pl.BlockSpec((1, C_in, t1), lambda i, j: (i, 0, j)),
                pl.BlockSpec((1, C_in, t1), lambda i, j: (i, 0, j)),
            ],
        ),
        compiler_params=cparams,
    )(x2, g1, b1, tproj3)

    # --- 2) conv1 (3x3) + bias + swish + LayerNorm2d(norm2) (fused) ----------
    # TODO(synk): im2col patch extraction / spatial zero-pad stays in XLA
    # (layout plumbing); the conv math runs on the MXU inside the kernel.
    y0 = y02[:, :, :HW].reshape(N, C_in, H, W)
    p1 = _pad_lanes(_im2col_3x3(y0), hw_pad)
    t2 = _pick_tile(hw_pad, C_in * 9 + C_out)
    y1 = pl.pallas_call(
        functools.partial(_conv_swish_ln_kernel, eps=eps),
        out_shape=jax.ShapeDtypeStruct((N, C_out, hw_pad), x.dtype),
        grid_spec=pltpu.PrefetchScalarGridSpec(
            num_scalar_prefetch=0,
            grid=(N, hw_pad // t2),
            in_specs=[
                pl.BlockSpec((C_out, C_in * 9), lambda i, j: (0, 0)),
                pl.BlockSpec((C_out, 1), lambda i, j: (0, 0)),
                pl.BlockSpec((1, C_in * 9, t2), lambda i, j: (i, 0, j)),
                pl.BlockSpec((C_out, 1), lambda i, j: (0, 0)),
                pl.BlockSpec((C_out, 1), lambda i, j: (0, 0)),
            ],
            out_specs=pl.BlockSpec((1, C_out, t2), lambda i, j: (i, 0, j)),
        ),
        compiler_params=cparams,
    )(w1f, bc1, p1, g2, b2)

    # --- 3) conv2 (3x3) + bias + swish + 1x1 skip + /sqrt(2) (fused) ---------
    y1_4d = y1[:, :, :HW].reshape(N, C_out, H, W)
    p2 = _pad_lanes(_im2col_3x3(y1_4d), hw_pad)
    t3 = _pick_tile(hw_pad, C_out * 9 + C_in + C_out)
    out = pl.pallas_call(
        _conv_swish_skip_kernel,
        out_shape=jax.ShapeDtypeStruct((N, C_out, hw_pad), x.dtype),
        grid_spec=pltpu.PrefetchScalarGridSpec(
            num_scalar_prefetch=0,
            grid=(N, hw_pad // t3),
            in_specs=[
                pl.BlockSpec((C_out, C_out * 9), lambda i, j: (0, 0)),
                pl.BlockSpec((C_out, 1), lambda i, j: (0, 0)),
                pl.BlockSpec((1, C_out * 9, t3), lambda i, j: (i, 0, j)),
                pl.BlockSpec((C_out, C_in), lambda i, j: (0, 0)),
                pl.BlockSpec((C_out, 1), lambda i, j: (0, 0)),
                pl.BlockSpec((1, C_in, t3), lambda i, j: (i, 0, j)),
            ],
            out_specs=pl.BlockSpec((1, C_out, t3), lambda i, j: (i, 0, j)),
        ),
        compiler_params=cparams,
    )(w2f, bc2, p2, ws, bs, xn2)

    return out[:, :, :HW].reshape(N, C_out, H, W)


# ----------------------------- reference --------------------------------------

def _reference(x, t, params, eps=1e-5):
    def ln(z, g, b):
        u = jnp.mean(z, axis=1, keepdims=True)
        v = jnp.mean((z - u) ** 2, axis=1, keepdims=True)
        return (z - u) / jnp.sqrt(v + eps) * g[None, :, None, None] + b[None, :, None, None]

    def conv(z, w, b):
        y = lax.conv_general_dilated(z, w, (1, 1), "SAME",
                                     dimension_numbers=("NCHW", "OIHW", "NCHW"),
                                     precision=_HIGH)
        return y + b[None, :, None, None]

    xn = ln(x, params["g1"], params["b1"])
    tp = jnp.dot(t, params["proj_w"].T, precision=_HIGH) + params["proj_b"]
    y = xn + tp[:, :, None, None]
    y = conv(y, params["conv1_w"], params["conv1_b"])
    y = y * jax.nn.sigmoid(y)
    y = ln(y, params["g2"], params["b2"])
    y = conv(y, params["conv2_w"], params["conv2_b"])
    y = y * jax.nn.sigmoid(y)
    if x.shape[1] != params["conv1_w"].shape[0]:
        skip = conv(xn, params["scale_w"][:, :, None, None], params["scale_b"])
    else:
        skip = xn
    return (y + skip) / jnp.sqrt(2.0)


# ----------------------------- test -------------------------------------------

if __name__ == "__main__":
    key = jax.random.PRNGKey(0)
    N, C_in, C_out, H, W, T_EMB = 2, 4, 8, 16, 16, 32
    keys = jax.random.split(key, 10)

    x = jax.random.normal(keys[0], (N, C_in, H, W), dtype=jnp.float32)
    t = jax.random.normal(keys[1], (N, T_EMB), dtype=jnp.float32)

    params = dict(
        # LayerNorm2d params init like PyTorch (ones / zeros)
        g1=jnp.ones((C_in,), jnp.float32),
        b1=jnp.zeros((C_in,), jnp.float32),
        g2=jnp.ones((C_out,), jnp.float32),
        b2=jnp.zeros((C_out,), jnp.float32),
        proj_w=0.2 * jax.random.normal(keys[2], (C_in, T_EMB), jnp.float32),
        proj_b=0.1 * jax.random.normal(keys[3], (C_in,), jnp.float32),
        conv1_w=0.2 * jax.random.normal(keys[4], (C_out, C_in, 3, 3), jnp.float32),
        conv1_b=0.1 * jax.random.normal(keys[5], (C_out,), jnp.float32),
        conv2_w=0.2 * jax.random.normal(keys[6], (C_out, C_out, 3, 3), jnp.float32),
        conv2_b=0.1 * jax.random.normal(keys[7], (C_out,), jnp.float32),
        scale_w=0.2 * jax.random.normal(keys[8], (C_out, C_in), jnp.float32),
        scale_b=0.1 * jax.random.normal(keys[9], (C_out,), jnp.float32),
    )

    y = residual_block_2d(x, t, params)
    y = jax.block_until_ready(y)

    y_ref = _reference(x, t, params)
    assert y.shape == (N, C_out, H, W)
    max_err = float(jnp.max(jnp.abs(y - y_ref)))
    assert jnp.allclose(y, y_ref, atol=1e-4, rtol=1e-4), f"mismatch vs reference (max abs err {max_err})"
    print("KERNEL_OK")
</pallas_src>

<mosaic_0001>
module attributes {stable_mosaic.version = 11 : i64} {
  func.func @_linear_kernel(%arg0: i32, %arg1: memref<2x32xf32, #tpu.memory_space<vmem>>, %arg2: memref<32x4xf32, #tpu.memory_space<vmem>>, %arg3: memref<1x4xf32, #tpu.memory_space<vmem>>, %arg4: memref<2x4xf32, #tpu.memory_space<vmem>>) attributes {dimension_semantics = [#tpu.dimension_semantics<arbitrary>], iteration_bounds = array<i64: 1>, scalar_prefetch = 0 : i64, scratch_operands = 0 : i64, tpu.core_type = #tpu.core_type<tc>, window_params = [{pipeline_mode = #tpu.pipeline_mode<synchronous>, transform_indices = @transform_0, window_bounds = array<i64: 2, 32>}, {pipeline_mode = #tpu.pipeline_mode<synchronous>, transform_indices = @transform_1, window_bounds = array<i64: 32, 4>}, {pipeline_mode = #tpu.pipeline_mode<synchronous>, transform_indices = @transform_2, window_bounds = array<i64: 1, 4>}, {pipeline_mode = #tpu.pipeline_mode<synchronous>, transform_indices = @transform_3, window_bounds = array<i64: 2, 4>}]} {
    %c0 = arith.constant 0 : index
    %c0_0 = arith.constant 0 : index
    %0 = vector.load %arg1[%c0, %c0_0] : memref<2x32xf32, #tpu.memory_space<vmem>>, vector<2x32xf32>
    %c0_1 = arith.constant 0 : index
    %c0_2 = arith.constant 0 : index
    %1 = vector.load %arg2[%c0_1, %c0_2] : memref<32x4xf32, #tpu.memory_space<vmem>>, vector<32x4xf32>
    %cst = arith.constant dense<0.000000e+00> : vector<2x4xf32>
    %2 = tpu.matmul %0, %1, %cst {dimension_numbers = #tpu.dot_dimension_numbers<[1], [0], [0], [1], [0, 0, 1, 1], [], []>, precision = #tpu.contract_precision<fp32>} : vector<2x32xf32>, vector<32x4xf32>, vector<2x4xf32> -> vector<2x4xf32>
    %c0_3 = arith.constant 0 : index
    %c0_4 = arith.constant 0 : index
    %3 = vector.load %arg3[%c0_3, %c0_4] : memref<1x4xf32, #tpu.memory_space<vmem>>, vector<1x4xf32>
    %4 = vector.broadcast %3 : vector<1x4xf32> to vector<2x4xf32>
    %5 = arith.addf %2, %4 : vector<2x4xf32>
    %c0_5 = arith.constant 0 : index
    %c0_6 = arith.constant 0 : index
    %6 = vector.load %arg4[%c0_5, %c0_6] : memref<2x4xf32, #tpu.memory_space<vmem>>, vector<2x4xf32>
    tpu.vector_store %arg4[%c0_5, %c0_6], %5 {strides = array<i32>} : memref<2x4xf32, #tpu.memory_space<vmem>>, vector<2x4xf32>,
    return
  }
  func.func @transform_0(%arg0: i32) -> (i32, i32) {
    %c0_i32 = arith.constant 0 : i32
    %c0_i32_0 = arith.constant 0 : i32
    %c0_i32_1 = arith.constant 0 : i32
    return %c0_i32, %c0_i32_0 : i32, i32
  }
  func.func @transform_1(%arg0: i32) -> (i32, i32) {
    %c0_i32 = arith.constant 0 : i32
    %c0_i32_0 = arith.constant 0 : i32
    %c0_i32_1 = arith.constant 0 : i32
    return %c0_i32, %c0_i32_0 : i32, i32
  }
  func.func @transform_2(%arg0: i32) -> (i32, i32) {
    %c0_i32 = arith.constant 0 : i32
    %c0_i32_0 = arith.constant 0 : i32
    %c0_i32_1 = arith.constant 0 : i32
    return %c0_i32, %c0_i32_0 : i32, i32
  }
  func.func @transform_3(%arg0: i32) -> (i32, i32) {
    %c0_i32 = arith.constant 0 : i32
    %c0_i32_0 = arith.constant 0 : i32
    %c0_i32_1 = arith.constant 0 : i32
    return %c0_i32, %c0_i32_0 : i32, i32
  }
}

</mosaic_0001>

<llo_original>
// kernel: tpu_custom_call.1
$region0: #{tpu_custom_call.1}
  #allocation0 [shape = 'u32[]', space=smem, size = 0x4, offset = 0x4, fixed_abs, tag = 'smem constant byte address 0x4 - core index']
  #allocation1 [shape = 'u32[144,128]{1,0:T(1,128)}', space=vmem, size = 0x12000, scoped, tag = 'internal scratch']
  %s0 = inlined_call_operand.vmem [shape: f32[2,32], index: 0, kind: input, shape index: {}]
  %s1 = inlined_call_operand.vmem [shape: f32[32,4], index: 1, kind: input, shape index: {}]
  %s2 = inlined_call_operand.vmem [shape: f32[1,4], index: 2, kind: input, shape index: {}]
  %s3 = inlined_call_operand.hbm [shape: f32[2,4], index: 3, kind: output, shape index: {}]
  %s4 = sld [smem:[#allocation0]]
  $region22: #{tpu_custom_call.1} parent=0
    _
  %s6 = ssub.s32 1, %s4
  %s7 = scalar_select 0, %s6, %s4
  $region1: #{tpu_custom_call.1} parent=0
    #allocation2 [shape = 'u8[1024]{0}', space=vmem, size = 0x400, scoped, tag = 'output window, operand 0, single buffered']
    #allocation3 [shape = 's32[1]{0}', space=sflag, size = 0x4, scoped, tag = 'scoped memory for tpu_custom_call.1']
    %8 = vsyncpa [#allocation3], 0
    // Predicated region
    $region2: #{tpu_custom_call.1} parent=1 // pred_check
      _
    $region3: #{tpu_custom_call.1} parent=1 // pred_check_branch
      %10 = sbr.rel (0) target = $region5
    $region4: #{tpu_custom_call.1} parent=1 // pred_region
      _
    $region5: #{tpu_custom_call.1} parent=1 // pred_fallthru
      _
    // Predicated region
    $region6: #{tpu_custom_call.1} parent=1 // pred_check
      _
    $region7: #{tpu_custom_call.1} parent=1 // pred_check_branch
      %12 = sbr.rel (0) target = $region9
    $region8: #{tpu_custom_call.1} parent=1 // pred_region
      _
    $region9: #{tpu_custom_call.1} parent=1 // pred_fallthru
      _
    // Predicated region
    $region10: #{tpu_custom_call.1} parent=1 // pred_check
      _
    $region11: #{tpu_custom_call.1} parent=1 // pred_check_branch
      %14 = sbr.rel (0) target = $region13
    $region12: #{tpu_custom_call.1} parent=1 // pred_region
      _
    $region13: #{tpu_custom_call.1} parent=1 // pred_fallthru
      _
    %v15 = vld [vmem:[%s0] sm:$0x3]
    %v16 = vld [vmem:[%s1] sm:$0xff]
    %v17 = vld [vmem:[%s1 + $0x8] sm:$0xff]
    %v18 = vld [vmem:[%s1 + $0x10] sm:$0xff]
    %v19 = vld [vmem:[%s1 + $0x18] sm:$0xff]
    %v20 = vld [vmem:[%s2] sm:$0x1]
    %v22 = vlaneseq
    %v23 = vshrl.u32 %v22, 7
    %v24 = vsub.s32 0, %v23
    %v25 = vrot.slane %v20, %v24
    %vm27 = vcmask 261120
    %v29 = vsel %vm27, %v15, 0
    %31 = vmatprep.subr.mxu0 0.0
    %v32 = vand.u32 %v16, 4294901760
    %33 = vmatpush1.msra.mxu0 %v32
    %34 = vmatprep.subr.mxu0 0.0
    %v35 = vand.u32 %v17, 4294901760
    %36 = vmatpush1.msra.mxu0 %v35
    %37 = vmatprep.subr.mxu0 0.0
    %v38 = vand.u32 %v18, 4294901760
    %39 = vmatpush1.msra.mxu0 %v38
    %40 = vmatprep.subr.mxu0 0.0
    %v41 = vand.u32 %v19, 4294901760
    %42 = vmatpush1.msra.mxu0 %v41
    %43 = vmatprep.subr.mxu0 0.0
    %44 = vmatpush1.msra.mxu0 0.0
    %45 = vmatprep.subr.mxu0 0.0
    %46 = vmatpush1.msra.mxu0 0.0
    %47 = vmatprep.subr.mxu0 0.0
    %48 = vmatpush1.msra.mxu0 0.0
    %49 = vmatprep.subr.mxu0 0.0
    %50 = vmatpush1.msra.mxu0 0.0
    %51 = vmatprep.subr.mxu0 0.0
    %52 = vmatpush1.msra.mxu0 0.0
    %53 = vmatprep.subr.mxu0 0.0
    %54 = vmatpush1.msra.mxu0 0.0
    %55 = vmatprep.subr.mxu0 0.0
    %56 = vmatpush1.msra.mxu0 0.0
    %57 = vmatprep.subr.mxu0 0.0
    %58 = vmatpush1.msra.mxu0 0.0
    %59 = vmatprep.subr.mxu0 0.0
    %60 = vmatpush1.msra.mxu0 0.0
    %61 = vmatprep.subr.mxu0 0.0
    %62 = vmatpush1.msra.mxu0 0.0
    %63 = vmatprep.subr.mxu0 0.0
    %64 = vmatpush1.msra.mxu0 0.0
    %65 = vmatprep.subr.mxu0 0.0
    %66 = vmatpush1.msra.mxu0 0.0
    %67 = vmatprep.subr.mxu0 0.0
    %68 = vmatpush1.msra.mxu0 0.0
    %69 = vmatprep.subr.mxu0 0.0
    %70 = vmatpush1.msra.mxu0 0.0
    %71 = vmatprep.subr.mxu0 0.0
    %72 = vmatpush1.msra.mxu0 0.0
    %73 = vmatprep.subr.mxu0 0.0
    %74 = vmatpush1.msra.mxu0 0.0
    %75 = vmatprep.subr.mxu0 0.0
    %76 = vmatpush1.msra.mxu0 0.0
    %77 = vmatprep.subr.mxu0 0.0
    %78 = vmatpush1.msra.mxu0 0.0
    %79 = vmatprep.subr.mxu0 0.0
    %80 = vmatpush1.msra.mxu0 0.0
    %81 = vmatprep.subr.mxu0 0.0
    %82 = vmatpush1.msra.mxu0 0.0
    %83 = vmatprep.subr.mxu0 0.0
    %84 = vmatpush1.msra.mxu0 0.0
    %85 = vmatprep.subr.mxu0 0.0
    %86 = vmatpush1.msra.mxu0 0.0
    %87 = vmatprep.subr.mxu0 0.0
    %88 = vmatpush1.msra.mxu0 0.0
    %89 = vmatprep.subr.mxu0 0.0
    %90 = vmatpush1.msra.mxu0 0.0
    %91 = vmatprep.subr.mxu0 0.0
    %92 = vmatpush1.msra.mxu0 0.0
    %93 = vmatprep.subr.mxu0 0.0
    %94 = vmatpush1.msra.mxu0 0.0
    %95 = vmatprep.subr.mxu0 0.0
    %96 = vmatpush1.msra.mxu0 0.0
    %97 = vmatprep.subr.mxu0 0.0
    %98 = vmatpush1.msra.mxu0 0.0
    %99 = vmatprep.mubr.f32.mxu0 0.0
    %v100 = vand.u32 %v29, 4294901760
    %v101 = vsub.f32 %v29, %v100
    %v102 = vand.u32 %v101, 4294901760
    %v103 = vsub.f32 %v101, %v102
    %v104 = vand.u32 %v103, 4294901760
    %105 = vmatmul.mubr.f32.gmra.mrb[0].mxu0 %v104
    %v106 = vpop.f32.mrb[0].mxu0
    %v107 = vadd.f32 %v25, %v106
    %v108 = vpop.f32.mrb[0].mxu0
    %109 = vdwg.mxu0
    %110 = vmatprep.subr.mxu0 0.0
    %v111 = vand.u32 %v16, 4294901760
    %v112 = vsub.f32 %v16, %v111
    %v113 = vand.u32 %v112, 4294901760
    %v114 = vsub.f32 %v112, %v113
    %v115 = vand.u32 %v114, 4294901760
    %116 = vmatpush1.msra.mxu0 %v115
    %117 = vmatprep.subr.mxu0 0.0
    %v118 = vand.u32 %v17, 4294901760
    %v119 = vsub.f32 %v17, %v118
    %v120 = vand.u32 %v119, 4294901760
    %v121 = vsub.f32 %v119, %v120
    %v122 = vand.u32 %v121, 4294901760
    %123 = vmatpush1.msra.mxu0 %v122
    %124 = vmatprep.subr.mxu0 0.0
    %v125 = vand.u32 %v18, 4294901760
    %v126 = vsub.f32 %v18, %v125
    %v127 = vand.u32 %v126, 4294901760
    %v128 = vsub.f32 %v126, %v127
    %v129 = vand.u32 %v128, 4294901760
    %130 = vmatpush1.msra.mxu0 %v129
    %131 = vmatprep.subr.mxu0 0.0
    %v132 = vand.u32 %v19, 4294901760
    %v133 = vsub.f32 %v19, %v132
    %v134 = vand.u32 %v133, 4294901760
    %v135 = vsub.f32 %v133, %v134
    %v136 = vand.u32 %v135, 4294901760
    %137 = vmatpush1.msra.mxu0 %v136
    %138 = vmatprep.subr.mxu0 0.0
    %139 = vmatpush1.msra.mxu0 0.0
    %140 = vmatprep.subr.mxu0 0.0
    %141 = vmatpush1.msra.mxu0 0.0
    %142 = vmatprep.subr.mxu0 0.0
    %143 = vmatpush1.msra.mxu0 0.0
    %144 = vmatprep.subr.mxu0 0.0
    %145 = vmatpush1.msra.mxu0 0.0
    %146 = vmatprep.subr.mxu0 0.0
    %147 = vmatpush1.msra.mxu0 0.0
    %148 = vmatprep.subr.mxu0 0.0
    %149 = vmatpush1.msra.mxu0 0.0
    %150 = vmatprep.subr.mxu0 0.0
    %151 = vmatpush1.msra.mxu0 0.0
    %152 = vmatprep.subr.mxu0 0.0
    %153 = vmatpush1.msra.mxu0 0.0
    %154 = vmatprep.subr.mxu0 0.0
    %155 = vmatpush1.msra.mxu0 0.0
    %156 = vmatprep.subr.mxu0 0.0
    %157 = vmatpush1.msra.mxu0 0.0
    %158 = vmatprep.subr.mxu0 0.0
    %159 = vmatpush1.msra.mxu0 0.0
    %160 = vmatprep.subr.mxu0 0.0
    %161 = vmatpush1.msra.mxu0 0.0
    %162 = vmatprep.subr.mxu0 0.0
    %163 = vmatpush1.msra.mxu0 0.0
    %164 = vmatprep.subr.mxu0 0.0
    %165 = vmatpush1.msra.mxu0 0.0
    %166 = vmatprep.subr.mxu0 0.0
    %167 = vmatpush1.msra.mxu0 0.0
    %168 = vmatprep.subr.mxu0 0.0
    %169 = vmatpush1.msra.mxu0 0.0
    %170 = vmatprep.subr.mxu0 0.0
    %171 = vmatpush1.msra.mxu0 0.0
    %172 = vmatprep.subr.mxu0 0.0
    %173 = vmatpush1.msra.mxu0 0.0
    %174 = vmatprep.subr.mxu0 0.0
    %175 = vmatpush1.msra.mxu0 0.0
    %176 = vmatprep.subr.mxu0 0.0
    %177 = vmatpush1.msra.mxu0 0.0
    %178 = vmatprep.subr.mxu0 0.0
    %179 = vmatpush1.msra.mxu0 0.0
    %180 = vmatprep.subr.mxu0 0.0
    %181 = vmatpush1.msra.mxu0 0.0
    %182 = vmatprep.subr.mxu0 0.0
    %183 = vmatpush1.msra.mxu0 0.0
    %184 = vmatprep.subr.mxu0 0.0
    %185 = vmatpush1.msra.mxu0 0.0
    %186 = vmatprep.subr.mxu0 0.0
    %187 = vmatpush1.msra.mxu0 0.0
    %188 = vmatprep.subr.mxu0 0.0
    %189 = vmatpush1.msra.mxu0 0.0
    %190 = vmatprep.subr.mxu0 0.0
    %191 = vmatpush1.msra.mxu0 0.0
    %192 = vmatprep.subr.mxu0 0.0
    %193 = vmatpush1.msra.mxu0 0.0
    %194 = vmatprep.mubr.f32.mxu0 0.0
    %v195 = vand.u32 %v29, 4294901760
    %196 = vmatmul.mubr.f32.gmra.mrb[0].mxu0 %v195
    %v197 = vpop.f32.mrb[0].mxu0
    %v198 = vadd.f32 %v107, %v197
    %v199 = vpop.f32.mrb[0].mxu0
    %200 = vdwg.mxu0
    %201 = vmatprep.subr.mxu0 0.0
    %v202 = vand.u32 %v16, 4294901760
    %v203 = vsub.f32 %v16, %v202
    %204 = vmatpush1.msra.mxu0 %v203
    %205 = vmatprep.subr.mxu0 0.0
    %v206 = vand.u32 %v17, 4294901760
    %v207 = vsub.f32 %v17, %v206
    %208 = vmatpush1.msra.mxu0 %v207
    %209 = vmatprep.subr.mxu0 0.0
    %v210 = vand.u32 %v18, 4294901760
    %v211 = vsub.f32 %v18, %v210
    %212 = vmatpush1.msra.mxu0 %v211
    %213 = vmatprep.subr.mxu0 0.0
    %v214 = vand.u32 %v19, 4294901760
    %v215 = vsub.f32 %v19, %v214
    %216 = vmatpush1.msra.mxu0 %v215
    %217 = vmatprep.subr.mxu0 0.0
    %218 = vmatpush1.msra.mxu0 0.0
    %219 = vmatprep.subr.mxu0 0.0
    %220 = vmatpush1.msra.mxu0 0.0
    %221 = vmatprep.subr.mxu0 0.0
    %222 = vmatpush1.msra.mxu0 0.0
    %223 = vmatprep.subr.mxu0 0.0
    %224 = vmatpush1.msra.mxu0 0.0
    %225 = vmatprep.subr.mxu0 0.0
    %226 = vmatpush1.msra.mxu0 0.0
    %227 = vmatprep.subr.mxu0 0.0
    %228 = vmatpush1.msra.mxu0 0.0
    %229 = vmatprep.subr.mxu0 0.0
    %230 = vmatpush1.msra.mxu0 0.0
    %231 = vmatprep.subr.mxu0 0.0
    %232 = vmatpush1.msra.mxu0 0.0
    %233 = vmatprep.subr.mxu0 0.0
    %234 = vmatpush1.msra.mxu0 0.0
    %235 = vmatprep.subr.mxu0 0.0
    %236 = vmatpush1.msra.mxu0 0.0
    %237 = vmatprep.subr.mxu0 0.0
    %238 = vmatpush1.msra.mxu0 0.0
    %239 = vmatprep.subr.mxu0 0.0
    %240 = vmatpush1.msra.mxu0 0.0
    %241 = vmatprep.subr.mxu0 0.0
    %242 = vmatpush1.msra.mxu0 0.0
    %243 = vmatprep.subr.mxu0 0.0
    %244 = vmatpush1.msra.mxu0 0.0
    %245 = vmatprep.subr.mxu0 0.0
    %246 = vmatpush1.msra.mxu0 0.0
    %247 = vmatprep.subr.mxu0 0.0
    %248 = vmatpush1.msra.mxu0 0.0
    %249 = vmatprep.subr.mxu0 0.0
    %250 = vmatpush1.msra.mxu0 0.0
    %251 = vmatprep.subr.mxu0 0.0
    %252 = vmatpush1.msra.mxu0 0.0
    %253 = vmatprep.subr.mxu0 0.0
    %254 = vmatpush1.msra.mxu0 0.0
    %255 = vmatprep.subr.mxu0 0.0
    %256 = vmatpush1.msra.mxu0 0.0
    %257 = vmatprep.subr.mxu0 0.0
    %258 = vmatpush1.msra.mxu0 0.0
    %259 = vmatprep.subr.mxu0 0.0
    %260 = vmatpush1.msra.mxu0 0.0
    %261 = vmatprep.subr.mxu0 0.0
    %262 = vmatpush1.msra.mxu0 0.0
    %263 = vmatprep.subr.mxu0 0.0
    %264 = vmatpush1.msra.mxu0 0.0
    %265 = vmatprep.subr.mxu0 0.0
    %266 = vmatpush1.msra.mxu0 0.0
    %267 = vmatprep.subr.mxu0 0.0
    %268 = vmatpush1.msra.mxu0 0.0
    %269 = vmatprep.subr.mxu0 0.0
    %270 = vmatpush1.msra.mxu0 0.0
    %271 = vmatprep.subr.mxu0 0.0
    %272 = vmatpush1.msra.mxu0 0.0
    %273 = vmatprep.mubr.f32.mxu0 0.0
    %v274 = vand.u32 %v29, 4294901760
    %v275 = vsub.f32 %v29, %v274
    %276 = vmatmul.mubr.f32.gmra.mrb[0].mxu0 %v275
    %v277 = vpop.f32.mrb[0].mxu0
    %v278 = vadd.f32 %v198, %v277
    %v279 = vpop.f32.mrb[0].mxu0
    %280 = vdwg.mxu0
    %281 = vmatprep.subr.mxu0 0.0
    %v282 = vand.u32 %v16, 4294901760
    %283 = vmatpush1.msra.mxu0 %v282
    %284 = vmatprep.subr.mxu0 0.0
    %v285 = vand.u32 %v17, 4294901760
    %286 = vmatpush1.msra.mxu0 %v285
    %287 = vmatprep.subr.mxu0 0.0
    %v288 = vand.u32 %v18, 4294901760
    %289 = vmatpush1.msra.mxu0 %v288
    %290 = vmatprep.subr.mxu0 0.0
    %v291 = vand.u32 %v19, 4294901760
    %292 = vmatpush1.msra.mxu0 %v291
    %293 = vmatprep.subr.mxu0 0.0
    %294 = vmatpush1.msra.mxu0 0.0
    %295 = vmatprep.subr.mxu0 0.0
    %296 = vmatpush1.msra.mxu0 0.0
    %297 = vmatprep.subr.mxu0 0.0
    %298 = vmatpush1.msra.mxu0 0.0
    %299 = vmatprep.subr.mxu0 0.0
    %300 = vmatpush1.msra.mxu0 0.0
    %301 = vmatprep.subr.mxu0 0.0
    %302 = vmatpush1.msra.mxu0 0.0
    %303 = vmatprep.subr.mxu0 0.0
    %304 = vmatpush1.msra.mxu0 0.0
    %305 = vmatprep.subr.mxu0 0.0
    %306 = vmatpush1.msra.mxu0 0.0
    %307 = vmatprep.subr.mxu0 0.0
    %308 = vmatpush1.msra.mxu0 0.0
    %309 = vmatprep.subr.mxu0 0.0
    %310 = vmatpush1.msra.mxu0 0.0
    %311 = vmatprep.subr.mxu0 0.0
    %312 = vmatpush1.msra.mxu0 0.0
    %313 = vmatprep.subr.mxu0 0.0
    %314 = vmatpush1.msra.mxu0 0.0
    %315 = vmatprep.subr.mxu0 0.0
    %316 = vmatpush1.msra.mxu0 0.0
    %317 = vmatprep.subr.mxu0 0.0
    %318 = vmatpush1.msra.mxu0 0.0
    %319 = vmatprep.subr.mxu0 0.0
    %320 = vmatpush1.msra.mxu0 0.0
    %321 = vmatprep.subr.mxu0 0.0
    %322 = vmatpush1.msra.mxu0 0.0
    %323 = vmatprep.subr.mxu0 0.0
    %324 = vmatpush1.msra.mxu0 0.0
    %325 = vmatprep.subr.mxu0 0.0
    %326 = vmatpush1.msra.mxu0 0.0
    %327 = vmatprep.subr.mxu0 0.0
    %328 = vmatpush1.msra.mxu0 0.0
    %329 = vmatprep.subr.mxu0 0.0
    %330 = vmatpush1.msra.mxu0 0.0
    %331 = vmatprep.subr.mxu0 0.0
    %332 = vmatpush1.msra.mxu0 0.0
    %333 = vmatprep.subr.mxu0 0.0
    %334 = vmatpush1.msra.mxu0 0.0
    %335 = vmatprep.subr.mxu0 0.0
    %336 = vmatpush1.msra.mxu0 0.0
    %337 = vmatprep.subr.mxu0 0.0
    %338 = vmatpush1.msra.mxu0 0.0
    %339 = vmatprep.subr.mxu0 0.0
    %340 = vmatpush1.msra.mxu0 0.0
    %341 = vmatprep.subr.mxu0 0.0
    %342 = vmatpush1.msra.mxu0 0.0
    %343 = vmatprep.subr.mxu0 0.0
    %344 = vmatpush1.msra.mxu0 0.0
    %345 = vmatprep.subr.mxu0 0.0
    %346 = vmatpush1.msra.mxu0 0.0
    %347 = vmatprep.subr.mxu0 0.0
    %348 = vmatpush1.msra.mxu0 0.0
    %349 = vmatprep.mubr.f32.mxu0 0.0
    %v350 = vand.u32 %v29, 4294901760
    %v351 = vsub.f32 %v29, %v350
    %v352 = vand.u32 %v351, 4294901760
    %353 = vmatmul.mubr.f32.gmra.mrb[0].mxu0 %v352
    %v354 = vpop.f32.mrb[0].mxu0
    %v355 = vadd.f32 %v278, %v354
    %v356 = vpop.f32.mrb[0].mxu0
    %357 = vdwg.mxu0
    %358 = vmatprep.subr.mxu0 0.0
    %v359 = vand.u32 %v16, 4294901760
    %v360 = vsub.f32 %v16, %v359
    %v361 = vand.u32 %v360, 4294901760
    %362 = vmatpush1.msra.mxu0 %v361
    %363 = vmatprep.subr.mxu0 0.0
    %v364 = vand.u32 %v17, 4294901760
    %v365 = vsub.f32 %v17, %v364
    %v366 = vand.u32 %v365, 4294901760
    %367 = vmatpush1.msra.mxu0 %v366
    %368 = vmatprep.subr.mxu0 0.0
    %v369 = vand.u32 %v18, 4294901760
    %v370 = vsub.f32 %v18, %v369
    %v371 = vand.u32 %v370, 4294901760
    %372 = vmatpush1.msra.mxu0 %v371
    %373 = vmatprep.subr.mxu0 0.0
    %v374 = vand.u32 %v19, 4294901760
    %v375 = vsub.f32 %v19, %v374
    %v376 = vand.u32 %v375, 4294901760
    %377 = vmatpush1.msra.mxu0 %v376
    %378 = vmatprep.subr.mxu0 0.0
    %379 = vmatpush1.msra.mxu0 0.0
    %380 = vmatprep.subr.mxu0 0.0
    %381 = vmatpush1.msra.mxu0 0.0
    %382 = vmatprep.subr.mxu0 0.0
    %383 = vmatpush1.msra.mxu0 0.0
    %384 = vmatprep.subr.mxu0 0.0
    %385 = vmatpush1.msra.mxu0 0.0
    %386 = vmatprep.subr.mxu0 0.0
    %387 = vmatpush1.msra.mxu0 0.0
    %388 = vmatprep.subr.mxu0 0.0
    %389 = vmatpush1.msra.mxu0 0.0
    %390 = vmatprep.subr.mxu0 0.0
    %391 = vmatpush1.msra.mxu0 0.0
    %392 = vmatprep.subr.mxu0 0.0
    %393 = vmatpush1.msra.mxu0 0.0
    %394 = vmatprep.subr.mxu0 0.0
    %395 = vmatpush1.msra.mxu0 0.0
    %396 = vmatprep.subr.mxu0 0.0
    %397 = vmatpush1.msra.mxu0 0.0
    %398 = vmatprep.subr.mxu0 0.0
    %399 = vmatpush1.msra.mxu0 0.0
    %400 = vmatprep.subr.mxu0 0.0
    %401 = vmatpush1.msra.mxu0 0.0
    %402 = vmatprep.subr.mxu0 0.0
    %403 = vmatpush1.msra.mxu0 0.0
    %404 = vmatprep.subr.mxu0 0.0
    %405 = vmatpush1.msra.mxu0 0.0
    %406 = vmatprep.subr.mxu0 0.0
    %407 = vmatpush1.msra.mxu0 0.0
    %408 = vmatprep.subr.mxu0 0.0
    %409 = vmatpush1.msra.mxu0 0.0
    %410 = vmatprep.subr.mxu0 0.0
    %411 = vmatpush1.msra.mxu0 0.0
    %412 = vmatprep.subr.mxu0 0.0
    %413 = vmatpush1.msra.mxu0 0.0
    %414 = vmatprep.subr.mxu0 0.0
    %415 = vmatpush1.msra.mxu0 0.0
    %416 = vmatprep.subr.mxu0 0.0
    %417 = vmatpush1.msra.mxu0 0.0
    %418 = vmatprep.subr.mxu0 0.0
    %419 = vmatpush1.msra.mxu0 0.0
    %420 = vmatprep.subr.mxu0 0.0
    %421 = vmatpush1.msra.mxu0 0.0
    %422 = vmatprep.subr.mxu0 0.0
    %423 = vmatpush1.msra.mxu0 0.0
    %424 = vmatprep.subr.mxu0 0.0
    %425 = vmatpush1.msra.mxu0 0.0
    %426 = vmatprep.subr.mxu0 0.0
    %427 = vmatpush1.msra.mxu0 0.0
    %428 = vmatprep.subr.mxu0 0.0
    %429 = vmatpush1.msra.mxu0 0.0
    %430 = vmatprep.subr.mxu0 0.0
    %431 = vmatpush1.msra.mxu0 0.0
    %432 = vmatprep.subr.mxu0 0.0
    %433 = vmatpush1.msra.mxu0 0.0
    %434 = vmatprep.mubr.f32.mxu0 0.0
    %v435 = vand.u32 %v29, 4294901760
    %436 = vmatmul.mubr.f32.gmra.mrb[0].mxu0 %v435
    %v437 = vpop.f32.mrb[0].mxu0
    %v438 = vadd.f32 %v355, %v437
    %v439 = vpop.f32.mrb[0].mxu0
    %440 = vdwg.mxu0
    %441 = vmatprep.subr.mxu0 0.0
    %v442 = vand.u32 %v16, 4294901760
    %443 = vmatpush1.msra.mxu0 %v442
    %444 = vmatprep.subr.mxu0 0.0
    %v445 = vand.u32 %v17, 4294901760
    %446 = vmatpush1.msra.mxu0 %v445
    %447 = vmatprep.subr.mxu0 0.0
    %v448 = vand.u32 %v18, 4294901760
    %449 = vmatpush1.msra.mxu0 %v448
    %450 = vmatprep.subr.mxu0 0.0
    %v451 = vand.u32 %v19, 4294901760
    %452 = vmatpush1.msra.mxu0 %v451
    %453 = vmatprep.subr.mxu0 0.0
    %454 = vmatpush1.msra.mxu0 0.0
    %455 = vmatprep.subr.mxu0 0.0
    %456 = vmatpush1.msra.mxu0 0.0
    %457 = vmatprep.subr.mxu0 0.0
    %458 = vmatpush1.msra.mxu0 0.0
    %459 = vmatprep.subr.mxu0 0.0
    %460 = vmatpush1.msra.mxu0 0.0
    %461 = vmatprep.subr.mxu0 0.0
    %462 = vmatpush1.msra.mxu0 0.0
    %463 = vmatprep.subr.mxu0 0.0
    %464 = vmatpush1.msra.mxu0 0.0
    %465 = vmatprep.subr.mxu0 0.0
    %466 = vmatpush1.msra.mxu0 0.0
    %467 = vmatprep.subr.mxu0 0.0
    %468 = vmatpush1.msra.mxu0 0.0
    %469 = vmatprep.subr.mxu0 0.0
    %470 = vmatpush1.msra.mxu0 0.0
    %471 = vmatprep.subr.mxu0 0.0
    %472 = vmatpush1.msra.mxu0 0.0
    %473 = vmatprep.subr.mxu0 0.0
    %474 = vmatpush1.msra.mxu0 0.0
    %475 = vmatprep.subr.mxu0 0.0
    %476 = vmatpush1.msra.mxu0 0.0
    %477 = vmatprep.subr.mxu0 0.0
    %478 = vmatpush1.msra.mxu0 0.0
    %479 = vmatprep.subr.mxu0 0.0
    %480 = vmatpush1.msra.mxu0 0.0
    %481 = vmatprep.subr.mxu0 0.0
    %482 = vmatpush1.msra.mxu0 0.0
    %483 = vmatprep.subr.mxu0 0.0
    %484 = vmatpush1.msra.mxu0 0.0
    %485 = vmatprep.subr.mxu0 0.0
    %486 = vmatpush1.msra.mxu0 0.0
    %487 = vmatprep.subr.mxu0 0.0
    %488 = vmatpush1.msra.mxu0 0.0
    %489 = vmatprep.subr.mxu0 0.0
    %490 = vmatpush1.msra.mxu0 0.0
    %491 = vmatprep.subr.mxu0 0.0
    %492 = vmatpush1.msra.mxu0 0.0
    %493 = vmatprep.subr.mxu0 0.0
    %494 = vmatpush1.msra.mxu0 0.0
    %495 = vmatprep.subr.mxu0 0.0
    %496 = vmatpush1.msra.mxu0 0.0
    %497 = vmatprep.subr.mxu0 0.0
    %498 = vmatpush1.msra.mxu0 0.0
    %499 = vmatprep.subr.mxu0 0.0
    %500 = vmatpush1.msra.mxu0 0.0
    %501 = vmatprep.subr.mxu0 0.0
    %502 = vmatpush1.msra.mxu0 0.0
    %503 = vmatprep.subr.mxu0 0.0
    %504 = vmatpush1.msra.mxu0 0.0
    %505 = vmatprep.subr.mxu0 0.0
    %506 = vmatpush1.msra.mxu0 0.0
    %507 = vmatprep.subr.mxu0 0.0
    %508 = vmatpush1.msra.mxu0 0.0
    %509 = vmatprep.mubr.f32.mxu0 0.0
    %v510 = vand.u32 %v29, 4294901760
    %511 = vmatmul.mubr.f32.gmra.mrb[0].mxu0 %v510
    %v512 = vpop.f32.mrb[0].mxu0
    %v513 = vadd.f32 %v438, %v512
    %v514 = vpop.f32.mrb[0].mxu0
    %515 = vdwg.mxu0
    %vm516 = vcmask 25600
    %517 = vst.msk [vmem:[#allocation2] sm:$0x3] %vm516, %v513
    // Predicated region
    $region14: #{tpu_custom_call.1} parent=1 // pred_check
      _
    $region15: #{tpu_custom_call.1} parent=1 // pred_check_branch
      %519 = sbr.rel (0) target = $region17
    $region16: #{tpu_custom_call.1} parent=1 // pred_region
      %s521 = ssub.s32 32, 32
      %522 = vsyncadd [#allocation3], %s521
      %s524 = sshll.u32 [#allocation2], 4
      %s525 = int_to_ptr.vmem [resolvable:$true] %s524
      %527 = dma.vmem_to_hbm [thread:$0]  %s525, 32, %s3, [#allocation3]
    $region17: #{tpu_custom_call.1} parent=1 // pred_fallthru
      _
    // Predicated region
    $region18: #{tpu_custom_call.1} parent=1 // pred_check
      _
    $region19: #{tpu_custom_call.1} parent=1 // pred_check_branch
      %529 = sbr.rel (0) target = $region21
    $region20: #{tpu_custom_call.1} parent=1 // pred_region
      %530 = dma.done [#allocation3], 32
    $region21: #{tpu_custom_call.1} parent=1 // pred_fallthru
      _
    %531 = vsyncpa [#allocation3], 1

</llo_original>
